<compile_context>
chip_gen: v6e
topology: v6e:2x2x1
jax: 0.10.0
libtpu: 0.0.40
codegen_flags: <defaults>
</compile_context>

<pallas_src>
import jax
import jax.numpy as jnp
import numpy as np
from jax.experimental import pallas as pl
from jax.experimental.pallas import tpu as pltpu

H = W = 5                 # spatial size
HW = H * W                # 25
C1, C2, NOUT = 8, 16, 32


# -----------------------------------------------------------------------------
# Fused kernel: rows = channel*25 + spatial, lanes = batch tile.
# -----------------------------------------------------------------------------
def _vision_net_kernel(x_ref, g1_ref, b1_ref, g2_ref, b2_ref,
                       fcw_ref, fcb_ref, o_ref):
    x = x_ref[...]                                                  # (25, bt)
    # conv1 (1->8) + ReLU : one (200,25)@(25,bt) dot
    h1 = jnp.maximum(
        jnp.dot(g1_ref[...], x, preferred_element_type=jnp.float32)
        + b1_ref[...], 0.0)                                         # (200, bt)
    # conv2 (8->16) + ReLU : one (400,200)@(200,bt) dot
    h2 = jnp.maximum(
        jnp.dot(g2_ref[...], h1, preferred_element_type=jnp.float32)
        + b2_ref[...], 0.0)                                         # (400, bt)
    # fc (400->32) + ReLU : one (32,400)@(400,bt) dot; rows of h2 are already
    # in PyTorch's (C,H,W) flatten order so fcw is used unmodified.
    o_ref[...] = jnp.maximum(
        jnp.dot(fcw_ref[...], h2, preferred_element_type=jnp.float32)
        + fcb_ref[...], 0.0)                                        # (32, bt)


def _round_up(n, m):
    return (n + m - 1) // m * m


def _fused_forward(xT, g1, b1c, g2, b2c, fcw, fcbc):
    _, B = xT.shape
    # Lane (batch) tiling: full-width single tile for small B; otherwise lane
    # tiles that are multiples of 128 (512 when possible) so blocks satisfy the
    # (8,128) rule, stores are unmasked, and the grid axis can run in parallel.
    if B <= 128:
        bt, Bp = B, B
    else:
        bt = 512 if B >= 512 else 128
        Bp = _round_up(B, bt)
    if Bp != B:
        xT = jnp.pad(xT, ((0, 0), (0, Bp - B)))

    weights = (g1, b1c, g2, b2c, fcw, fcbc)
    # Constant block index -> weights stay VMEM-resident across grid steps.
    resident_specs = [pl.BlockSpec(w.shape, lambda i: (0, 0)) for w in weights]

    flops = 2 * Bp * (g1.shape[0] * g1.shape[1]
                      + g2.shape[0] * g2.shape[1]
                      + fcw.shape[0] * fcw.shape[1])
    nbytes = 4 * (xT.size + sum(int(w.size) for w in weights) + NOUT * Bp)

    out = pl.pallas_call(
        _vision_net_kernel,
        out_shape=jax.ShapeDtypeStruct((NOUT, Bp), jnp.float32),
        grid=(Bp // bt,),
        in_specs=[pl.BlockSpec((HW, bt), lambda i: (0, i))] + resident_specs,
        out_specs=pl.BlockSpec((NOUT, bt), lambda i: (0, i)),
        compiler_params=pltpu.CompilerParams(
            dimension_semantics=("parallel",)),
        cost_estimate=pl.CostEstimate(flops=flops, transcendentals=0,
                                      bytes_accessed=nbytes),
    )(xT, *weights)
    return out[:, :B]


# -----------------------------------------------------------------------------
# One-time parameter preparation (batch-size independent).
# -----------------------------------------------------------------------------
def _dense_conv_operator(w_oihw):
    """G[co*25 + p_out, ci*25 + p_in] = w[co, ci, kh, kw] for 3x3 / pad 1."""
    w = np.asarray(w_oihw, np.float32)
    cout, cin = w.shape[0], w.shape[1]
    G = np.zeros((cout * HW, cin * HW), np.float32)
    co_idx = np.arange(cout)[:, None] * HW
    ci_idx = np.arange(cin)[None, :] * HW
    for h in range(H):
        for wp in range(W):
            p_out = h * W + wp
            for kh in range(3):
                for kw in range(3):
                    hi, wi = h + kh - 1, wp + kw - 1
                    if 0 <= hi < H and 0 <= wi < W:
                        p_in = hi * W + wi
                        G[p_out + co_idx, p_in + ci_idx] = w[:, :, kh, kw]
    return jnp.asarray(G)


def prepare_params(params):
    """Fold convs into dense operators once; independent of batch size."""
    return {
        "g1": _dense_conv_operator(params["w1"]),                  # (200, 25)
        "g2": _dense_conv_operator(params["w2"]),                  # (400, 200)
        "b1c": jnp.repeat(params["b1"], HW).reshape(C1 * HW, 1),   # (200, 1)
        "b2c": jnp.repeat(params["b2"], HW).reshape(C2 * HW, 1),   # (400, 1)
        "fcw": params["fcw"],                                      # (32, 400)
        "fcbc": params["fcb"].reshape(NOUT, 1),                    # (32, 1)
    }


@jax.jit
def vision_net_forward(x_nchw, prep):
    """x_nchw: (B, 1, 5, 5) float32 -> (B, 32) float32."""
    B = x_nchw.shape[0]
    xT = x_nchw.reshape(B, HW).T                    # (25, B): batch on lanes
    outT = _fused_forward(xT, prep["g1"], prep["b1c"], prep["g2"], prep["b2c"],
                          prep["fcw"], prep["fcbc"])                # (32, B)
    return outT.T                                                   # (B, 32)


# -----------------------------------------------------------------------------
# Deterministic parameter init (PyTorch shapes) and pure-JAX reference.
# -----------------------------------------------------------------------------
def init_params(key):
    ks = jax.random.split(key, 6)

    def u(k, shape, fan_in):
        bound = 1.0 / np.sqrt(fan_in)
        return jax.random.uniform(k, shape, jnp.float32, -bound, bound)

    return {
        "w1": u(ks[0], (8, 1, 3, 3), 1 * 9),
        "b1": u(ks[1], (8,), 1 * 9),
        "w2": u(ks[2], (16, 8, 3, 3), 8 * 9),
        "b2": u(ks[3], (16,), 8 * 9),
        "fcw": u(ks[4], (32, 400), 400),
        "fcb": u(ks[5], (32,), 400),
    }


def reference_forward(x_nchw, params):
    dn = jax.lax.conv_dimension_numbers(x_nchw.shape, params["w1"].shape,
                                        ("NCHW", "OIHW", "NCHW"))
    h1 = jax.lax.conv_general_dilated(x_nchw, params["w1"], (1, 1),
                                      ((1, 1), (1, 1)), dimension_numbers=dn)
    h1 = jax.nn.relu(h1 + params["b1"][None, :, None, None])
    dn2 = jax.lax.conv_dimension_numbers(h1.shape, params["w2"].shape,
                                         ("NCHW", "OIHW", "NCHW"))
    h2 = jax.lax.conv_general_dilated(h1, params["w2"], (1, 1),
                                      ((1, 1), (1, 1)), dimension_numbers=dn2)
    h2 = jax.nn.relu(h2 + params["b2"][None, :, None, None])
    flat = h2.reshape(h2.shape[0], -1)
    return jax.nn.relu(flat @ params["fcw"].T + params["fcb"])


if __name__ == "__main__":
    key = jax.random.PRNGKey(0)
    k_x, k_p = jax.random.split(key)
    B = 2
    x = jax.random.normal(k_x, (B, 1, 5, 5), jnp.float32)
    params = init_params(k_p)

    prep = prepare_params(params)              # one-time, batch-independent

    out = jax.block_until_ready(vision_net_forward(x, prep))
    ref = jax.block_until_ready(reference_forward(x, params))

    np.testing.assert_allclose(np.asarray(out), np.asarray(ref),
                               rtol=1e-4, atol=1e-4)
    assert out.shape == (B, 32)
    print("KERNEL_OK")
</pallas_src>

<mosaic_0001>
module attributes {stable_mosaic.version = 11 : i64} {
  func.func @_vision_net_kernel(%arg0: i32, %arg1: memref<25x2xf32, #tpu.memory_space<vmem>>, %arg2: memref<200x25xf32, #tpu.memory_space<vmem>>, %arg3: memref<200x1xf32, #tpu.memory_space<vmem>>, %arg4: memref<400x200xf32, #tpu.memory_space<vmem>>, %arg5: memref<400x1xf32, #tpu.memory_space<vmem>>, %arg6: memref<32x400xf32, #tpu.memory_space<vmem>>, %arg7: memref<32x1xf32, #tpu.memory_space<vmem>>, %arg8: memref<32x2xf32, #tpu.memory_space<vmem>>) attributes {dimension_semantics = [#tpu.dimension_semantics<parallel>], iteration_bounds = array<i64: 1>, scalar_prefetch = 0 : i64, scratch_operands = 0 : i64, tpu.core_type = #tpu.core_type<tc>, window_params = [{transform_indices = @transform_0, window_bounds = array<i64: 25, 2>}, {pipeline_mode = #tpu.pipeline_mode<synchronous>, transform_indices = @transform_1, window_bounds = array<i64: 200, 25>}, {pipeline_mode = #tpu.pipeline_mode<synchronous>, transform_indices = @transform_2, window_bounds = array<i64: 200, 1>}, {pipeline_mode = #tpu.pipeline_mode<synchronous>, transform_indices = @transform_3, window_bounds = array<i64: 400, 200>}, {pipeline_mode = #tpu.pipeline_mode<synchronous>, transform_indices = @transform_4, window_bounds = array<i64: 400, 1>}, {pipeline_mode = #tpu.pipeline_mode<synchronous>, transform_indices = @transform_5, window_bounds = array<i64: 32, 400>}, {pipeline_mode = #tpu.pipeline_mode<synchronous>, transform_indices = @transform_6, window_bounds = array<i64: 32, 1>}, {transform_indices = @transform_7, window_bounds = array<i64: 32, 2>}]} {
    %c0 = arith.constant 0 : index
    %c0_0 = arith.constant 0 : index
    %0 = vector.load %arg1[%c0, %c0_0] : memref<25x2xf32, #tpu.memory_space<vmem>>, vector<25x2xf32>
    %c0_1 = arith.constant 0 : index
    %c0_2 = arith.constant 0 : index
    %1 = vector.load %arg2[%c0_1, %c0_2] : memref<200x25xf32, #tpu.memory_space<vmem>>, vector<200x25xf32>
    %cst = arith.constant dense<0.000000e+00> : vector<200x2xf32>
    %2 = tpu.matmul %1, %0, %cst {dimension_numbers = #tpu.dot_dimension_numbers<[1], [0], [0], [1], [0, 0, 1, 1], [], []>} : vector<200x25xf32>, vector<25x2xf32>, vector<200x2xf32> -> vector<200x2xf32>
    %c0_3 = arith.constant 0 : index
    %c0_4 = arith.constant 0 : index
    %3 = vector.load %arg3[%c0_3, %c0_4] : memref<200x1xf32, #tpu.memory_space<vmem>>, vector<200x1xf32>
    %4 = vector.broadcast %3 : vector<200x1xf32> to vector<200x2xf32>
    %5 = arith.addf %2, %4 : vector<200x2xf32>
    %cst_5 = arith.constant 0.000000e+00 : f32
    %6 = vector.broadcast %cst_5 : f32 to vector<200x2xf32>
    %7 = arith.maximumf %5, %6 : vector<200x2xf32>
    %c0_6 = arith.constant 0 : index
    %c0_7 = arith.constant 0 : index
    %8 = vector.load %arg4[%c0_6, %c0_7] : memref<400x200xf32, #tpu.memory_space<vmem>>, vector<400x200xf32>
    %cst_8 = arith.constant dense<0.000000e+00> : vector<400x2xf32>
    %9 = tpu.matmul %8, %7, %cst_8 {dimension_numbers = #tpu.dot_dimension_numbers<[1], [0], [0], [1], [0, 0, 1, 1], [], []>} : vector<400x200xf32>, vector<200x2xf32>, vector<400x2xf32> -> vector<400x2xf32>
    %c0_9 = arith.constant 0 : index
    %c0_10 = arith.constant 0 : index
    %10 = vector.load %arg5[%c0_9, %c0_10] : memref<400x1xf32, #tpu.memory_space<vmem>>, vector<400x1xf32>
    %11 = vector.broadcast %10 : vector<400x1xf32> to vector<400x2xf32>
    %12 = arith.addf %9, %11 : vector<400x2xf32>
    %cst_11 = arith.constant 0.000000e+00 : f32
    %13 = vector.broadcast %cst_11 : f32 to vector<400x2xf32>
    %14 = arith.maximumf %12, %13 : vector<400x2xf32>
    %c0_12 = arith.constant 0 : index
    %c0_13 = arith.constant 0 : index
    %15 = vector.load %arg6[%c0_12, %c0_13] : memref<32x400xf32, #tpu.memory_space<vmem>>, vector<32x400xf32>
    %cst_14 = arith.constant dense<0.000000e+00> : vector<32x2xf32>
    %16 = tpu.matmul %15, %14, %cst_14 {dimension_numbers = #tpu.dot_dimension_numbers<[1], [0], [0], [1], [0, 0, 1, 1], [], []>} : vector<32x400xf32>, vector<400x2xf32>, vector<32x2xf32> -> vector<32x2xf32>
    %c0_15 = arith.constant 0 : index
    %c0_16 = arith.constant 0 : index
    %17 = vector.load %arg7[%c0_15, %c0_16] : memref<32x1xf32, #tpu.memory_space<vmem>>, vector<32x1xf32>
    %18 = vector.broadcast %17 : vector<32x1xf32> to vector<32x2xf32>
    %19 = arith.addf %16, %18 : vector<32x2xf32>
    %cst_17 = arith.constant 0.000000e+00 : f32
    %20 = vector.broadcast %cst_17 : f32 to vector<32x2xf32>
    %21 = arith.maximumf %19, %20 : vector<32x2xf32>
    %c0_18 = arith.constant 0 : index
    %c0_19 = arith.constant 0 : index
    %22 = vector.load %arg8[%c0_18, %c0_19] : memref<32x2xf32, #tpu.memory_space<vmem>>, vector<32x2xf32>
    tpu.vector_store %arg8[%c0_18, %c0_19], %21 {strides = array<i32>} : memref<32x2xf32, #tpu.memory_space<vmem>>, vector<32x2xf32>,
    return
  }
  func.func @transform_0(%arg0: i32) -> (i32, i32) {
    %c0_i32 = arith.constant 0 : i32
    %c0_i32_0 = arith.constant 0 : i32
    return %c0_i32, %arg0 : i32, i32
  }
  func.func @transform_1(%arg0: i32) -> (i32, i32) {
    %c0_i32 = arith.constant 0 : i32
    %c0_i32_0 = arith.constant 0 : i32
    %c0_i32_1 = arith.constant 0 : i32
    return %c0_i32, %c0_i32_0 : i32, i32
  }
  func.func @transform_2(%arg0: i32) -> (i32, i32) {
    %c0_i32 = arith.constant 0 : i32
    %c0_i32_0 = arith.constant 0 : i32
    %c0_i32_1 = arith.constant 0 : i32
    return %c0_i32, %c0_i32_0 : i32, i32
  }
  func.func @transform_3(%arg0: i32) -> (i32, i32) {
    %c0_i32 = arith.constant 0 : i32
    %c0_i32_0 = arith.constant 0 : i32
    %c0_i32_1 = arith.constant 0 : i32
    return %c0_i32, %c0_i32_0 : i32, i32
  }
  func.func @transform_4(%arg0: i32) -> (i32, i32) {
    %c0_i32 = arith.constant 0 : i32
    %c0_i32_0 = arith.constant 0 : i32
    %c0_i32_1 = arith.constant 0 : i32
    return %c0_i32, %c0_i32_0 : i32, i32
  }
  func.func @transform_5(%arg0: i32) -> (i32, i32) {
    %c0_i32 = arith.constant 0 : i32
    %c0_i32_0 = arith.constant 0 : i32
    %c0_i32_1 = arith.constant 0 : i32
    return %c0_i32, %c0_i32_0 : i32, i32
  }
  func.func @transform_6(%arg0: i32) -> (i32, i32) {
    %c0_i32 = arith.constant 0 : i32
    %c0_i32_0 = arith.constant 0 : i32
    %c0_i32_1 = arith.constant 0 : i32
    return %c0_i32, %c0_i32_0 : i32, i32
  }
  func.func @transform_7(%arg0: i32) -> (i32, i32) {
    %c0_i32 = arith.constant 0 : i32
    %c0_i32_0 = arith.constant 0 : i32
    return %c0_i32, %arg0 : i32, i32
  }
}

</mosaic_0001>

<llo_original>
// kernel: vision_net_forward.1
$region0: #{vision_net_forward.1}
  #allocation0 [shape = 'u32[]', space=smem, size = 0x4, offset = 0x4, fixed_abs, tag = 'smem constant byte address 0x4 - core index']
  #allocation1 [shape = 'u32[144,128]{1,0:T(1,128)}', space=vmem, size = 0x12000, scoped, tag = 'internal scratch']
  %s0 = inlined_call_operand.vmem [shape: f32[25,2], index: 0, kind: input, shape index: {}]
  %s1 = inlined_call_operand.vmem [shape: f32[200,25], index: 1, kind: input, shape index: {}]
  %s2 = inlined_call_operand.vmem [shape: f32[200,1], index: 2, kind: input, shape index: {}]
  %s3 = inlined_call_operand.vmem [shape: f32[400,200], index: 3, kind: input, shape index: {}]
  %s4 = inlined_call_operand.vmem [shape: f32[400,1], index: 4, kind: input, shape index: {}]
  %s5 = inlined_call_operand.vmem [shape: f32[32,400], index: 5, kind: input, shape index: {}]
  %s6 = inlined_call_operand.vmem [shape: f32[32,1], index: 6, kind: input, shape index: {}]
  %s7 = inlined_call_operand.vmem [shape: f32[32,2], index: 7, kind: output, shape index: {}]
  %s8 = sld [smem:[#allocation0]]
  $region38: #{vision_net_forward.1} parent=0
    _
  %s10 = ssub.s32 1, %s8
  %s11 = scalar_select 0, %s10, %s8
  // Predicated region
  $region2: #{vision_net_forward.1} parent=0 // pred_check
    _
  $region3: #{vision_net_forward.1} parent=0 // pred_check_branch
    %13 = sbr.rel (0) target = $region5
  $region4: #{vision_net_forward.1} parent=0 // pred_region
    _
  $region5: #{vision_net_forward.1} parent=0 // pred_fallthru
    _
  // Predicated region
  $region6: #{vision_net_forward.1} parent=0 // pred_check
    _
  $region7: #{vision_net_forward.1} parent=0 // pred_check_branch
    %15 = sbr.rel (0) target = $region9
  $region8: #{vision_net_forward.1} parent=0 // pred_region
    _
  $region9: #{vision_net_forward.1} parent=0 // pred_fallthru
    _
  // Predicated region
  $region10: #{vision_net_forward.1} parent=0 // pred_check
    _
  $region11: #{vision_net_forward.1} parent=0 // pred_check_branch
    %17 = sbr.rel (0) target = $region13
  $region12: #{vision_net_forward.1} parent=0 // pred_region
    _
  $region13: #{vision_net_forward.1} parent=0 // pred_fallthru
    _
  // Predicated region
  $region14: #{vision_net_forward.1} parent=0 // pred_check
    _
  $region15: #{vision_net_forward.1} parent=0 // pred_check_branch
    %19 = sbr.rel (0) target = $region17
  $region16: #{vision_net_forward.1} parent=0 // pred_region
    _
  $region17: #{vision_net_forward.1} parent=0 // pred_fallthru
    _
  // Predicated region
  $region18: #{vision_net_forward.1} parent=0 // pred_check
    _
  $region19: #{vision_net_forward.1} parent=0 // pred_check_branch
    %21 = sbr.rel (0) target = $region21
  $region20: #{vision_net_forward.1} parent=0 // pred_region
    _
  $region21: #{vision_net_forward.1} parent=0 // pred_fallthru
    _
  // Predicated region
  $region22: #{vision_net_forward.1} parent=0 // pred_check
    _
  $region23: #{vision_net_forward.1} parent=0 // pred_check_branch
    %23 = sbr.rel (0) target = $region25
  $region24: #{vision_net_forward.1} parent=0 // pred_region
    _
  $region25: #{vision_net_forward.1} parent=0 // pred_fallthru
    _
  // Predicated region
  $region26: #{vision_net_forward.1} parent=0 // pred_check
    _
  $region27: #{vision_net_forward.1} parent=0 // pred_check_branch
    %25 = sbr.rel (0) target = $region29
  $region28: #{vision_net_forward.1} parent=0 // pred_region
    _
  $region29: #{vision_net_forward.1} parent=0 // pred_fallthru
    _
  %v26 = vld [vmem:[%s0] sm:$0xff]
  %v27 = vld [vmem:[%s0 + $0x8] sm:$0xff]
  %v28 = vld [vmem:[%s0 + $0x10] sm:$0xff]
  %v29 = vld [vmem:[%s0 + $0x18] sm:$0x1]
  %v30 = vld [vmem:[%s1] sm:$0xff]
  %v31 = vld [vmem:[%s1 + $0x8] sm:$0xff]
  %v32 = vld [vmem:[%s1 + $0x10] sm:$0xff]
  %v33 = vld [vmem:[%s1 + $0x18] sm:$0xff]
  %v34 = vld [vmem:[%s1 + $0x20] sm:$0xff]
  %v35 = vld [vmem:[%s1 + $0x28] sm:$0xff]
  %v36 = vld [vmem:[%s1 + $0x30] sm:$0xff]
  %v37 = vld [vmem:[%s1 + $0x38] sm:$0xff]
  %v38 = vld [vmem:[%s1 + $0x40] sm:$0xff]
  %v39 = vld [vmem:[%s1 + $0x48] sm:$0xff]
  %v40 = vld [vmem:[%s1 + $0x50] sm:$0xff]
  %v41 = vld [vmem:[%s1 + $0x58] sm:$0xff]
  %v42 = vld [vmem:[%s1 + $0x60] sm:$0xff]
  %v43 = vld [vmem:[%s1 + $0x68] sm:$0xff]
  %v44 = vld [vmem:[%s1 + $0x70] sm:$0xff]
  %v45 = vld [vmem:[%s1 + $0x78] sm:$0xff]
  %v46 = vld [vmem:[%s1 + $0x80] sm:$0xff]
  %v47 = vld [vmem:[%s1 + $0x88] sm:$0xff]
  %v48 = vld [vmem:[%s1 + $0x90] sm:$0xff]
  %v49 = vld [vmem:[%s1 + $0x98] sm:$0xff]
  %v50 = vld [vmem:[%s1 + $0xa0] sm:$0xff]
  %v51 = vld [vmem:[%s1 + $0xa8] sm:$0xff]
  %v52 = vld [vmem:[%s1 + $0xb0] sm:$0xff]
  %v53 = vld [vmem:[%s1 + $0xb8] sm:$0xff]
  %v54 = vld [vmem:[%s1 + $0xc0] sm:$0xff]
  %v55 = vld [vmem:[%s2] sm:$0xff]
  %v56 = vld [vmem:[%s2 + $0x8] sm:$0xff]
  %v57 = vld [vmem:[%s2 + $0x10] sm:$0xff]
  %v58 = vld [vmem:[%s2 + $0x18] sm:$0xff]
  %v59 = vld [vmem:[%s2 + $0x20] sm:$0xff]
  %v60 = vld [vmem:[%s2 + $0x28] sm:$0xff]
  %v61 = vld [vmem:[%s2 + $0x30] sm:$0xff]
  %v62 = vld [vmem:[%s2 + $0x38] sm:$0xff]
  %v63 = vld [vmem:[%s2 + $0x40] sm:$0xff]
  %v64 = vld [vmem:[%s2 + $0x48] sm:$0xff]
  %v65 = vld [vmem:[%s2 + $0x50] sm:$0xff]
  %v66 = vld [vmem:[%s2 + $0x58] sm:$0xff]
  %v67 = vld [vmem:[%s2 + $0x60] sm:$0xff]
  %v68 = vld [vmem:[%s2 + $0x68] sm:$0xff]
  %v69 = vld [vmem:[%s2 + $0x70] sm:$0xff]
  %v70 = vld [vmem:[%s2 + $0x78] sm:$0xff]
  %v71 = vld [vmem:[%s2 + $0x80] sm:$0xff]
  %v72 = vld [vmem:[%s2 + $0x88] sm:$0xff]
  %v73 = vld [vmem:[%s2 + $0x90] sm:$0xff]
  %v74 = vld [vmem:[%s2 + $0x98] sm:$0xff]
  %v75 = vld [vmem:[%s2 + $0xa0] sm:$0xff]
  %v76 = vld [vmem:[%s2 + $0xa8] sm:$0xff]
  %v77 = vld [vmem:[%s2 + $0xb0] sm:$0xff]
  %v78 = vld [vmem:[%s2 + $0xb8] sm:$0xff]
  %v79 = vld [vmem:[%s2 + $0xc0] sm:$0xff]
  %81 = vset.pattern.permute.xlu0 0
  %82 = vperm.xlu0 %81, %v55
  %v83 = vpop.permute.xlu0 %82
  %86 = vset.pattern.permute.xlu0 0
  %87 = vperm.xlu0 %86, %v56
  %v88 = vpop.permute.xlu0 %87
  %91 = vset.pattern.permute.xlu0 0
  %92 = vperm.xlu0 %91, %v57
  %v93 = vpop.permute.xlu0 %92
  %96 = vset.pattern.permute.xlu0 0
  %97 = vperm.xlu0 %96, %v58
  %v98 = vpop.permute.xlu0 %97
  %101 = vset.pattern.permute.xlu0 0
  %102 = vperm.xlu0 %101, %v59
  %v103 = vpop.permute.xlu0 %102
  %106 = vset.pattern.permute.xlu0 0
  %107 = vperm.xlu0 %106, %v60
  %v108 = vpop.permute.xlu0 %107
  %111 = vset.pattern.permute.xlu0 0
  %112 = vperm.xlu0 %111, %v61
  %v113 = vpop.permute.xlu0 %112
  %116 = vset.pattern.permute.xlu0 0
  %117 = vperm.xlu0 %116, %v62
  %v118 = vpop.permute.xlu0 %117
  %121 = vset.pattern.permute.xlu0 0
  %122 = vperm.xlu0 %121, %v63
  %v123 = vpop.permute.xlu0 %122
  %126 = vset.pattern.permute.xlu0 0
  %127 = vperm.xlu0 %126, %v64
  %v128 = vpop.permute.xlu0 %127
  %131 = vset.pattern.permute.xlu0 0
  %132 = vperm.xlu0 %131, %v65
  %v133 = vpop.permute.xlu0 %132
  %136 = vset.pattern.permute.xlu0 0
  %137 = vperm.xlu0 %136, %v66
  %v138 = vpop.permute.xlu0 %137
  %141 = vset.pattern.permute.xlu0 0
  %142 = vperm.xlu0 %141, %v67
  %v143 = vpop.permute.xlu0 %142
  %146 = vset.pattern.permute.xlu0 0
  %147 = vperm.xlu0 %146, %v68
  %v148 = vpop.permute.xlu0 %147
  %151 = vset.pattern.permute.xlu0 0
  %152 = vperm.xlu0 %151, %v69
  %v153 = vpop.permute.xlu0 %152
  %156 = vset.pattern.permute.xlu0 0
  %157 = vperm.xlu0 %156, %v70
  %v158 = vpop.permute.xlu0 %157
  %161 = vset.pattern.permute.xlu0 0
  %162 = vperm.xlu0 %161, %v71
  %v163 = vpop.permute.xlu0 %162
  %166 = vset.pattern.permute.xlu0 0
  %167 = vperm.xlu0 %166, %v72
  %v168 = vpop.permute.xlu0 %167
  %171 = vset.pattern.permute.xlu0 0
  %172 = vperm.xlu0 %171, %v73
  %v173 = vpop.permute.xlu0 %172
  %176 = vset.pattern.permute.xlu0 0
  %177 = vperm.xlu0 %176, %v74
  %v178 = vpop.permute.xlu0 %177
  %181 = vset.pattern.permute.xlu0 0
  %182 = vperm.xlu0 %181, %v75
  %v183 = vpop.permute.xlu0 %182
  %186 = vset.pattern.permute.xlu0 0
  %187 = vperm.xlu0 %186, %v76
  %v188 = vpop.permute.xlu0 %187
  %191 = vset.pattern.permute.xlu0 0
  %192 = vperm.xlu0 %191, %v77
  %v193 = vpop.permute.xlu0 %192
  %196 = vset.pattern.permute.xlu0 0
  %197 = vperm.xlu0 %196, %v78
  %v198 = vpop.permute.xlu0 %197
  %201 = vset.pattern.permute.xlu0 0
  %202 = vperm.xlu0 %201, %v79
  %v203 = vpop.permute.xlu0 %202
  %vm205 = vcmask 203776
  %v207 = vsel %vm205, %v30, 0
  %v210 = vsel %vm205, %v31, 0
  %v213 = vsel %vm205, %v32, 0
  %v216 = vsel %vm205, %v33, 0
  %v219 = vsel %vm205, %v34, 0
  %v222 = vsel %vm205, %v35, 0
  %v225 = vsel %vm205, %v36, 0
  %v228 = vsel %vm205, %v37, 0
  %v231 = vsel %vm205, %v38, 0
  %v234 = vsel %vm205, %v39, 0
  %v237 = vsel %vm205, %v40, 0
  %v240 = vsel %vm205, %v41, 0
  %v243 = vsel %vm205, %v42, 0
  %v246 = vsel %vm205, %v43, 0
  %v249 = vsel %vm205, %v44, 0
  %v252 = vsel %vm205, %v45, 0
  %v255 = vsel %vm205, %v46, 0
  %v258 = vsel %vm205, %v47, 0
  %v261 = vsel %vm205, %v48, 0
  %v264 = vsel %vm205, %v49, 0
  %v267 = vsel %vm205, %v50, 0
  %v270 = vsel %vm205, %v51, 0
  %v273 = vsel %vm205, %v52, 0
  %v276 = vsel %vm205, %v53, 0
  %v279 = vsel %vm205, %v54, 0
  %vm281 = vcmask 1040384
  %v283 = vsel %vm281, %v29, 0
  %285 = vmatprep.subr.mxu0 0.0
  %286 = vmatpush1.msra.mxu0 0.0
  %287 = vmatprep.subr.mxu0 0.0
  %288 = vmatpush1.msra.mxu0 0.0
  %289 = vmatprep.subr.mxu0 0.0
  %290 = vmatpush1.msra.mxu0 0.0
  %291 = vmatprep.subr.mxu0 0.0
  %292 = vmatpush1.msra.mxu0 0.0
  %293 = vmatprep.subr.mxu0 0.0
  %294 = vmatpush1.msra.mxu0 0.0
  %295 = vmatprep.subr.mxu0 0.0
  %296 = vmatpush1.msra.mxu0 0.0
  %297 = vmatprep.subr.mxu0 0.0
  %298 = vmatpush1.msra.mxu0 0.0
  %299 = vmatprep.subr.mxu0 0.0
  %300 = vmatpush1.msra.mxu0 0.0
  %301 = vmatprep.subr.mxu0 0.0
  %302 = vmatpush1.msra.mxu0 0.0
  %303 = vmatprep.subr.mxu0 0.0
  %304 = vmatpush1.msra.mxu0 0.0
  %305 = vmatprep.subr.mxu0 0.0
  %306 = vmatpush1.msra.mxu0 0.0
  %307 = vmatprep.subr.mxu0 0.0
  %308 = vmatpush1.msra.mxu0 0.0
  %309 = vmatprep.subr.mxu0 0.0
  %310 = vmatpush1.msra.mxu0 %v283
  %311 = vmatprep.subr.mxu0 0.0
  %312 = vmatpush1.msra.mxu0 %v28
  %313 = vmatprep.subr.mxu0 0.0
  %314 = vmatpush1.msra.mxu0 %v27
  %315 = vmatprep.subr.mxu0 0.0
  %316 = vmatpush1.msra.mxu0 %v26
  %317 = vmatprep.subr.mxu0 0.0
  %318 = vmatpush2.msra.mxu0 0.0
  %319 = vmatprep.subr.mxu0 0.0
  %320 = vmatpush2.msra.mxu0 0.0
  %321 = vmatprep.subr.mxu0 0.0
  %322 = vmatpush2.msra.mxu0 0.0
  %323 = vmatprep.subr.mxu0 0.0
  %324 = vmatpush2.msra.mxu0 0.0
  %325 = vmatprep.subr.mxu0 0.0
  %326 = vmatpush2.msra.mxu0 0.0
  %327 = vmatprep.subr.mxu0 0.0
  %328 = vmatpush2.msra.mxu0 0.0
  %329 = vmatprep.subr.mxu0 0.0
  %330 = vmatpush2.msra.mxu0 0.0
  %331 = vmatprep.subr.mxu0 0.0
  %332 = vmatpush2.msra.mxu0 0.0
  %333 = vmatprep.subr.mxu0 0.0
  %334 = vmatpush2.msra.mxu0 0.0
  %335 = vmatprep.subr.mxu0 0.0
  %336 = vmatpush2.msra.mxu0 0.0
  %337 = vmatprep.subr.mxu0 0.0
  %338 = vmatpush2.msra.mxu0 0.0
  %339 = vmatprep.subr.mxu0 0.0
  %340 = vmatpush2.msra.mxu0 0.0
  %341 = vmatprep.subr.mxu0 0.0
  %342 = vmatpush2.msra.mxu0 0.0
  %343 = vmatprep.subr.mxu0 0.0
  %344 = vmatpush2.msra.mxu0 0.0
  %345 = vmatprep.subr.mxu0 0.0
  %346 = vmatpush2.msra.mxu0 0.0
  %347 = vmatprep.subr.mxu0 0.0
  %348 = vmatpush2.msra.mxu0 0.0
  %349 = vmatprep.mubr.f32.mxu0 0.0
  %350 = vmatmul.mubr.f32.gmra.mxu0 %v207
  %v351 = vpop.f32.mrf.mxu0
  %v352 = vadd.f32 %v83, %v351
  %v353 = vpop.f32.mrf.mxu0
  %354 = vmatprep.mubr.f32.mxu0 0.0
  %355 = vmatmul.mubr.f32.gmra.mxu0 %v210
  %v356 = vpop.f32.mrf.mxu0
  %v357 = vadd.f32 %v88, %v356
  %v358 = vpop.f32.mrf.mxu0
  %359 = vmatprep.mubr.f32.mxu0 0.0
  %360 = vmatmul.mubr.f32.gmra.mxu0 %v213
  %v361 = vpop.f32.mrf.mxu0
  %v362 = vadd.f32 %v93, %v361
  %v363 = vpop.f32.mrf.mxu0
  %364 = vmatprep.mubr.f32.mxu0 0.0
  %365 = vmatmul.mubr.f32.gmra.mxu0 %v216
  %v366 = vpop.f32.mrf.mxu0
  %v367 = vadd.f32 %v98, %v366
  %v368 = vpop.f32.mrf.mxu0
  %369 = vmatprep.mubr.f32.mxu0 0.0
  %370 = vmatmul.mubr.f32.gmra.mxu0 %v219
  %v371 = vpop.f32.mrf.mxu0
  %v372 = vadd.f32 %v103, %v371
  %v373 = vpop.f32.mrf.mxu0
  %374 = vmatprep.mubr.f32.mxu0 0.0
  %375 = vmatmul.mubr.f32.gmra.mxu0 %v222
  %v376 = vpop.f32.mrf.mxu0
  %v377 = vadd.f32 %v108, %v376
  %v378 = vpop.f32.mrf.mxu0
  %379 = vmatprep.mubr.f32.mxu0 0.0
  %380 = vmatmul.mubr.f32.gmra.mxu0 %v225
  %v381 = vpop.f32.mrf.mxu0
  %v382 = vadd.f32 %v113, %v381
  %v383 = vpop.f32.mrf.mxu0
  %384 = vmatprep.mubr.f32.mxu0 0.0
  %385 = vmatmul.mubr.f32.gmra.mxu0 %v228
  %v386 = vpop.f32.mrf.mxu0
  %v387 = vadd.f32 %v118, %v386
  %v388 = vpop.f32.mrf.mxu0
  %389 = vmatprep.mubr.f32.mxu0 0.0
  %390 = vmatmul.mubr.f32.gmra.mxu0 %v231
  %v391 = vpop.f32.mrf.mxu0
  %v392 = vadd.f32 %v123, %v391
  %v393 = vpop.f32.mrf.mxu0
  %394 = vmatprep.mubr.f32.mxu0 0.0
  %395 = vmatmul.mubr.f32.gmra.mxu0 %v234
  %v396 = vpop.f32.mrf.mxu0
  %v397 = vadd.f32 %v128, %v396
  %v398 = vpop.f32.mrf.mxu0
  %399 = vmatprep.mubr.f32.mxu0 0.0
  %400 = vmatmul.mubr.f32.gmra.mxu0 %v237
  %v401 = vpop.f32.mrf.mxu0
  %v402 = vadd.f32 %v133, %v401
  %v403 = vpop.f32.mrf.mxu0
  %404 = vmatprep.mubr.f32.mxu0 0.0
  %405 = vmatmul.mubr.f32.gmra.mxu0 %v240
  %v406 = vpop.f32.mrf.mxu0
  %v407 = vadd.f32 %v138, %v406
  %v408 = vpop.f32.mrf.mxu0
  %409 = vmatprep.mubr.f32.mxu0 0.0
  %410 = vmatmul.mubr.f32.gmra.mxu0 %v243
  %v411 = vpop.f32.mrf.mxu0
  %v412 = vadd.f32 %v143, %v411
  %v413 = vpop.f32.mrf.mxu0
  %414 = vmatprep.mubr.f32.mxu0 0.0
  %415 = vmatmul.mubr.f32.gmra.mxu0 %v246
  %v416 = vpop.f32.mrf.mxu0
  %v417 = vadd.f32 %v148, %v416
  %v418 = vpop.f32.mrf.mxu0
  %419 = vmatprep.mubr.f32.mxu0 0.0
  %420 = vmatmul.mubr.f32.gmra.mxu0 %v249
  %v421 = vpop.f32.mrf.mxu0
  %v422 = vadd.f32 %v153, %v421
  %v423 = vpop.f32.mrf.mxu0
  %424 = vmatprep.mubr.f32.mxu0 0.0
  %425 = vmatmul.mubr.f32.gmra.mxu0 %v252
  %v426 = vpop.f32.mrf.mxu0
  %v427 = vadd.f32 %v158, %v426
  %v428 = vpop.f32.mrf.mxu0
  %429 = vmatprep.mubr.f32.mxu0 0.0
  %430 = vmatmul.mubr.f32.gmra.mxu0 %v255
  %v431 = vpop.f32.mrf.mxu0
  %v432 = vadd.f32 %v163, %v431
  %v433 = vpop.f32.mrf.mxu0
  %434 = vmatprep.mubr.f32.mxu0 0.0
  %435 = vmatmul.mubr.f32.gmra.mxu0 %v258
  %v436 = vpop.f32.mrf.mxu0
  %v437 = vadd.f32 %v168, %v436
  %v438 = vpop.f32.mrf.mxu0
  %439 = vmatprep.mubr.f32.mxu0 0.0
  %440 = vmatmul.mubr.f32.gmra.mxu0 %v261
  %v441 = vpop.f32.mrf.mxu0
  %v442 = vadd.f32 %v173, %v441
  %v443 = vpop.f32.mrf.mxu0
  %444 = vmatprep.mubr.f32.mxu0 0.0
  %445 = vmatmul.mubr.f32.gmra.mxu0 %v264
  %v446 = vpop.f32.mrf.mxu0
  %v447 = vadd.f32 %v178, %v446
  %v448 = vpop.f32.mrf.mxu0
  %449 = vmatprep.mubr.f32.mxu0 0.0
  %450 = vmatmul.mubr.f32.gmra.mxu0 %v267
  %v451 = vpop.f32.mrf.mxu0
  %v452 = vadd.f32 %v183, %v451
  %v453 = vpop.f32.mrf.mxu0
  %454 = vmatprep.mubr.f32.mxu0 0.0
  %455 = vmatmul.mubr.f32.gmra.mxu0 %v270
  %v456 = vpop.f32.mrf.mxu0
  %v457 = vadd.f32 %v188, %v456
  %v458 = vpop.f32.mrf.mxu0
  %459 = vmatprep.mubr.f32.mxu0 0.0
  %460 = vmatmul.mubr.f32.gmra.mxu0 %v273
  %v461 = vpop.f32.mrf.mxu0
  %v462 = vadd.f32 %v193, %v461
  %v463 = vpop.f32.mrf.mxu0
  %464 = vmatprep.mubr.f32.mxu0 0.0
  %465 = vmatmul.mubr.f32.gmra.mxu0 %v276
  %v466 = vpop.f32.mrf.mxu0
  %v467 = vadd.f32 %v198, %v466
  %v468 = vpop.f32.mrf.mxu0
  %469 = vmatprep.mubr.f32.mxu0 0.0
  %470 = vmatmul.mubr.f32.gmra.mxu0 %v279
  %v471 = vpop.f32.mrf.mxu0
  %v472 = vadd.f32 %v203, %v471
  %v473 = vpop.f32.mrf.mxu0
  %474 = vdwg.mxu0
  %v475 = vmax.f32 %v352, 0.0
  %v476 = vmax.f32 %v357, 0.0
  %v477 = vmax.f32 %v362, 0.0
  %v478 = vmax.f32 %v367, 0.0
  %v479 = vmax.f32 %v372, 0.0
  %v480 = vmax.f32 %v377, 0.0
  %v481 = vmax.f32 %v382, 0.0
  %v482 = vmax.f32 %v387, 0.0
  %v483 = vmax.f32 %v392, 0.0
  %v484 = vmax.f32 %v397, 0.0
  %v485 = vmax.f32 %v402, 0.0
  %v486 = vmax.f32 %v407, 0.0
  %v487 = vmax.f32 %v412, 0.0
  %v488 = vmax.f32 %v417, 0.0
  %v489 = vmax.f32 %v422, 0.0
  %v490 = vmax.f32 %v427, 0.0
  %v491 = vmax.f32 %v432, 0.0
  %v492 = vmax.f32 %v437, 0.0
  %v493 = vmax.f32 %v442, 0.0
  %v494 = vmax.f32 %v447, 0.0
  %v495 = vmax.f32 %v452, 0.0
  %v496 = vmax.f32 %v457, 0.0
  %v497 = vmax.f32 %v462, 0.0
  %v498 = vmax.f32 %v467, 0.0
  %v499 = vmax.f32 %v472, 0.0
  %v500 = vld [vmem:[%s3] sm:$0xff]
  %v501 = vld [vmem:[%s3 + $0x8] sm:$0xff]
  %v502 = vld [vmem:[%s3 + $0x10] sm:$0xff]
  %v503 = vld [vmem:[%s3 + $0x18] sm:$0xff]
  %v504 = vld [vmem:[%s3 + $0x20] sm:$0xff]
  %v505 = vld [vmem:[%s3 + $0x28] sm:$0xff]
  %v506 = vld [vmem:[%s3 + $0x30] sm:$0xff]
  %v507 = vld [vmem:[%s3 + $0x38] sm:$0xff]
  %v508 = vld [vmem:[%s3 + $0x40] sm:$0xff]
  %v509 = vld [vmem:[%s3 + $0x48] sm:$0xff]
  %v510 = vld [vmem:[%s3 + $0x50] sm:$0xff]
  %v511 = vld [vmem:[%s3 + $0x58] sm:$0xff]
  %v512 = vld [vmem:[%s3 + $0x60] sm:$0xff]
  %v513 = vld [vmem:[%s3 + $0x68] sm:$0xff]
  %v514 = vld [vmem:[%s3 + $0x70] sm:$0xff]
  %v515 = vld [vmem:[%s3 + $0x78] sm:$0xff]
  %v516 = vld [vmem:[%s3 + $0x80] sm:$0xff]
  %v517 = vld [vmem:[%s3 + $0x88] sm:$0xff]
  %v518 = vld [vmem:[%s3 + $0x90] sm:$0xff]
  %v519 = vld [vmem:[%s3 + $0x98] sm:$0xff]
  %v520 = vld [vmem:[%s3 + $0xa0] sm:$0xff]
  %v521 = vld [vmem:[%s3 + $0xa8] sm:$0xff]
  %v522 = vld [vmem:[%s3 + $0xb0] sm:$0xff]
  %v523 = vld [vmem:[%s3 + $0xb8] sm:$0xff]
  %v524 = vld [vmem:[%s3 + $0xc0] sm:$0xff]
  %v525 = vld [vmem:[%s3 + $0xc8] sm:$0xff]
  %v526 = vld [vmem:[%s3 + $0xd0] sm:$0xff]
  %v527 = vld [vmem:[%s3 + $0xd8] sm:$0xff]
  %v528 = vld [vmem:[%s3 + $0xe0] sm:$0xff]
  %v529 = vld [vmem:[%s3 + $0xe8] sm:$0xff]
  %v530 = vld [vmem:[%s3 + $0xf0] sm:$0xff]
  %v531 = vld [vmem:[%s3 + $0xf8] sm:$0xff]
  %v532 = vld [vmem:[%s3 + $0x100] sm:$0xff]
  %v533 = vld [vmem:[%s3 + $0x108] sm:$0xff]
  %v534 = vld [vmem:[%s3 + $0x110] sm:$0xff]
  %v535 = vld [vmem:[%s3 + $0x118] sm:$0xff]
  %v536 = vld [vmem:[%s3 + $0x120] sm:$0xff]
  %v537 = vld [vmem:[%s3 + $0x128] sm:$0xff]
  %v538 = vld [vmem:[%s3 + $0x130] sm:$0xff]
  %v539 = vld [vmem:[%s3 + $0x138] sm:$0xff]
  %v540 = vld [vmem:[%s3 + $0x140] sm:$0xff]
  %v541 = vld [vmem:[%s3 + $0x148] sm:$0xff]
  %v542 = vld [vmem:[%s3 + $0x150] sm:$0xff]
  %v543 = vld [vmem:[%s3 + $0x158] sm:$0xff]
  %v544 = vld [vmem:[%s3 + $0x160] sm:$0xff]
  %v545 = vld [vmem:[%s3 + $0x168] sm:$0xff]
  %v546 = vld [vmem:[%s3 + $0x170] sm:$0xff]
  %v547 = vld [vmem:[%s3 + $0x178] sm:$0xff]
  %v548 = vld [vmem:[%s3 + $0x180] sm:$0xff]
  %v549 = vld [vmem:[%s3 + $0x188] sm:$0xff]
  %v550 = vld [vmem:[%s3 + $0x190] sm:$0xff]
  %v551 = vld [vmem:[%s3 + $0x198] sm:$0xff]
  %v552 = vld [vmem:[%s3 + $0x1a0] sm:$0xff]
  %v553 = vld [vmem:[%s3 + $0x1a8] sm:$0xff]
  %v554 = vld [vmem:[%s3 + $0x1b0] sm:$0xff]
  %v555 = vld [vmem:[%s3 + $0x1b8] sm:$0xff]
  %v556 = vld [vmem:[%s3 + $0x1c0] sm:$0xff]
  %v557 = vld [vmem:[%s3 + $0x1c8] sm:$0xff]
  %v558 = vld [vmem:[%s3 + $0x1d0] sm:$0xff]
  %v559 = vld [vmem:[%s3 + $0x1d8] sm:$0xff]
  %v560 = vld [vmem:[%s3 + $0x1e0] sm:$0xff]
  %v561 = vld [vmem:[%s3 + $0x1e8] sm:$0xff]
  %v562 = vld [vmem:[%s3 + $0x1f0] sm:$0xff]
  %v563 = vld [vmem:[%s3 + $0x1f8] sm:$0xff]
  %v564 = vld [vmem:[%s3 + $0x200] sm:$0xff]
  %v565 = vld [vmem:[%s3 + $0x208] sm:$0xff]
  %v566 = vld [vmem:[%s3 + $0x210] sm:$0xff]
  %v567 = vld [vmem:[%s3 + $0x218] sm:$0xff]
  %v568 = vld [vmem:[%s3 + $0x220] sm:$0xff]
  %v569 = vld [vmem:[%s3 + $0x228] sm:$0xff]
  %v570 = vld [vmem:[%s3 + $0x230] sm:$0xff]
  %v571 = vld [vmem:[%s3 + $0x238] sm:$0xff]
  %v572 = vld [vmem:[%s3 + $0x240] sm:$0xff]
  %v573 = vld [vmem:[%s3 + $0x248] sm:$0xff]
  %v574 = vld [vmem:[%s3 + $0x250] sm:$0xff]
  %v575 = vld [vmem:[%s3 + $0x258] sm:$0xff]
  %v576 = vld [vmem:[%s3 + $0x260] sm:$0xff]
  %v577 = vld [vmem:[%s3 + $0x268] sm:$0xff]
  %v578 = vld [vmem:[%s3 + $0x270] sm:$0xff]
  %v579 = vld [vmem:[%s3 + $0x278] sm:$0xff]
  %v580 = vld [vmem:[%s3 + $0x280] sm:$0xff]
  %v581 = vld [vmem:[%s3 + $0x288] sm:$0xff]
  %v582 = vld [vmem:[%s3 + $0x290] sm:$0xff]
  %v583 = vld [vmem:[%s3 + $0x298] sm:$0xff]
  %v584 = vld [vmem:[%s3 + $0x2a0] sm:$0xff]
  %v585 = vld [vmem:[%s3 + $0x2a8] sm:$0xff]
  %v586 = vld [vmem:[%s3 + $0x2b0] sm:$0xff]
  %v587 = vld [vmem:[%s3 + $0x2b8] sm:$0xff]
  %v588 = vld [vmem:[%s3 + $0x2c0] sm:$0xff]
  %v589 = vld [vmem:[%s3 + $0x2c8] sm:$0xff]
  %v590 = vld [vmem:[%s3 + $0x2d0] sm:$0xff]
  %v591 = vld [vmem:[%s3 + $0x2d8] sm:$0xff]
  %v592 = vld [vmem:[%s3 + $0x2e0] sm:$0xff]
  %v593 = vld [vmem:[%s3 + $0x2e8] sm:$0xff]
  %v594 = vld [vmem:[%s3 + $0x2f0] sm:$0xff]
  %v595 = vld [vmem:[%s3 + $0x2f8] sm:$0xff]
  %v596 = vld [vmem:[%s3 + $0x300] sm:$0xff]
  %v597 = vld [vmem:[%s3 + $0x308] sm:$0xff]
  %v598 = vld [vmem:[%s3 + $0x310] sm:$0xff]
  %v599 = vld [vmem:[%s3 + $0x318] sm:$0xff]
  %v600 = vld [vmem:[%s4] sm:$0xff]
  %v601 = vld [vmem:[%s4 + $0x8] sm:$0xff]
  %v602 = vld [vmem:[%s4 + $0x10] sm:$0xff]
  %v603 = vld [vmem:[%s4 + $0x18] sm:$0xff]
  %v604 = vld [vmem:[%s4 + $0x20] sm:$0xff]
  %v605 = vld [vmem:[%s4 + $0x28] sm:$0xff]
  %v606 = vld [vmem:[%s4 + $0x30] sm:$0xff]
  %v607 = vld [vmem:[%s4 + $0x38] sm:$0xff]
  %v608 = vld [vmem:[%s4 + $0x40] sm:$0xff]
  %v609 = vld [vmem:[%s4 + $0x48] sm:$0xff]
  %v610 = vld [vmem:[%s4 + $0x50] sm:$0xff]
  %v611 = vld [vmem:[%s4 + $0x58] sm:$0xff]
  %v612 = vld [vmem:[%s4 + $0x60] sm:$0xff]
  %v613 = vld [vmem:[%s4 + $0x68] sm:$0xff]
  %v614 = vld [vmem:[%s4 + $0x70] sm:$0xff]
  %v615 = vld [vmem:[%s4 + $0x78] sm:$0xff]
  %v616 = vld [vmem:[%s4 + $0x80] sm:$0xff]
  %v617 = vld [vmem:[%s4 + $0x88] sm:$0xff]
  %v618 = vld [vmem:[%s4 + $0x90] sm:$0xff]
  %v619 = vld [vmem:[%s4 + $0x98] sm:$0xff]
  %v620 = vld [vmem:[%s4 + $0xa0] sm:$0xff]
  %v621 = vld [vmem:[%s4 + $0xa8] sm:$0xff]
  %v622 = vld [vmem:[%s4 + $0xb0] sm:$0xff]
  %v623 = vld [vmem:[%s4 + $0xb8] sm:$0xff]
  %v624 = vld [vmem:[%s4 + $0xc0] sm:$0xff]
  %v625 = vld [vmem:[%s4 + $0xc8] sm:$0xff]
  %v626 = vld [vmem:[%s4 + $0xd0] sm:$0xff]
  %v627 = vld [vmem:[%s4 + $0xd8] sm:$0xff]
  %v628 = vld [vmem:[%s4 + $0xe0] sm:$0xff]
  %v629 = vld [vmem:[%s4 + $0xe8] sm:$0xff]
  %v630 = vld [vmem:[%s4 + $0xf0] sm:$0xff]
  %v631 = vld [vmem:[%s4 + $0xf8] sm:$0xff]
  %v632 = vld [vmem:[%s4 + $0x100] sm:$0xff]
  %v633 = vld [vmem:[%s4 + $0x108] sm:$0xff]
  %v634 = vld [vmem:[%s4 + $0x110] sm:$0xff]
  %v635 = vld [vmem:[%s4 + $0x118] sm:$0xff]
  %v636 = vld [vmem:[%s4 + $0x120] sm:$0xff]
  %v637 = vld [vmem:[%s4 + $0x128] sm:$0xff]
  %v638 = vld [vmem:[%s4 + $0x130] sm:$0xff]
  %v639 = vld [vmem:[%s4 + $0x138] sm:$0xff]
  %v640 = vld [vmem:[%s4 + $0x140] sm:$0xff]
  %v641 = vld [vmem:[%s4 + $0x148] sm:$0xff]
  %v642 = vld [vmem:[%s4 + $0x150] sm:$0xff]
  %v643 = vld [vmem:[%s4 + $0x158] sm:$0xff]
  %v644 = vld [vmem:[%s4 + $0x160] sm:$0xff]
  %v645 = vld [vmem:[%s4 + $0x168] sm:$0xff]
  %v646 = vld [vmem:[%s4 + $0x170] sm:$0xff]
  %v647 = vld [vmem:[%s4 + $0x178] sm:$0xff]
  %v648 = vld [vmem:[%s4 + $0x180] sm:$0xff]
  %v649 = vld [vmem:[%s4 + $0x188] sm:$0xff]
  %651 = vset.pattern.permute.xlu0 0
  %652 = vperm.xlu0 %651, %v600
  %v653 = vpop.permute.xlu0 %652
  %656 = vset.pattern.permute.xlu0 0
  %657 = vperm.xlu0 %656, %v601
  %v658 = vpop.permute.xlu0 %657
  %661 = vset.pattern.permute.xlu0 0
  %662 = vperm.xlu0 %661, %v602
  %v663 = vpop.permute.xlu0 %662
  %666 = vset.pattern.permute.xlu0 0
  %667 = vperm.xlu0 %666, %v603
  %v668 = vpop.permute.xlu0 %667
  %671 = vset.pattern.permute.xlu0 0
  %672 = vperm.xlu0 %671, %v604
  %v673 = vpop.permute.xlu0 %672
  %676 = vset.pattern.permute.xlu0 0
  %677 = vperm.xlu0 %676, %v605
  %v678 = vpop.permute.xlu0 %677
  %681 = vset.pattern.permute.xlu0 0
  %682 = vperm.xlu0 %681, %v606
  %v683 = vpop.permute.xlu0 %682
  %686 = vset.pattern.permute.xlu0 0
  %687 = vperm.xlu0 %686, %v607
  %v688 = vpop.permute.xlu0 %687
  %691 = vset.pattern.permute.xlu0 0
  %692 = vperm.xlu0 %691, %v608
  %v693 = vpop.permute.xlu0 %692
  %696 = vset.pattern.permute.xlu0 0
  %697 = vperm.xlu0 %696, %v609
  %v698 = vpop.permute.xlu0 %697
  %701 = vset.pattern.permute.xlu0 0
  %702 = vperm.xlu0 %701, %v610
  %v703 = vpop.permute.xlu0 %702
  %706 = vset.pattern.permute.xlu0 0
  %707 = vperm.xlu0 %706, %v611
  %v708 = vpop.permute.xlu0 %707
  %711 = vset.pattern.permute.xlu0 0
  %712 = vperm.xlu0 %711, %v612
  %v713 = vpop.permute.xlu0 %712
  %716 = vset.pattern.permute.xlu0 0
  %717 = vperm.xlu0 %716, %v613
  %v718 = vpop.permute.xlu0 %717
  %721 = vset.pattern.permute.xlu0 0
  %722 = vperm.xlu0 %721, %v614
  %v723 = vpop.permute.xlu0 %722
  %726 = vset.pattern.permute.xlu0 0
  %727 = vperm.xlu0 %726, %v615
  %v728 = vpop.permute.xlu0 %727
  %731 = vset.pattern.permute.xlu0 0
  %732 = vperm.xlu0 %731, %v616
  %v733 = vpop.permute.xlu0 %732
  %736 = vset.pattern.permute.xlu0 0
  %737 = vperm.xlu0 %736, %v617
  %v738 = vpop.permute.xlu0 %737
  %741 = vset.pattern.permute.xlu0 0
  %742 = vperm.xlu0 %741, %v618
  %v743 = vpop.permute.xlu0 %742
  %746 = vset.pattern.permute.xlu0 0
  %747 = vperm.xlu0 %746, %v619
  %v748 = vpop.permute.xlu0 %747
  %751 = vset.pattern.permute.xlu0 0
  %752 = vperm.xlu0 %751, %v620
  %v753 = vpop.permute.xlu0 %752
  %756 = vset.pattern.permute.xlu0 0
  %757 = vperm.xlu0 %756, %v621
  %v758 = vpop.permute.xlu0 %757
  %761 = vset.pattern.permute.xlu0 0
  %762 = vperm.xlu0 %761, %v622
  %v763 = vpop.permute.xlu0 %762
  %766 = vset.pattern.permute.xlu0 0
  %767 = vperm.xlu0 %766, %v623
  %v768 = vpop.permute.xlu0 %767
  %771 = vset.pattern.permute.xlu0 0
  %772 = vperm.xlu0 %771, %v624
  %v773 = vpop.permute.xlu0 %772
  %776 = vset.pattern.permute.xlu0 0
  %777 = vperm.xlu0 %776, %v625
  %v778 = vpop.permute.xlu0 %777
  %781 = vset.pattern.permute.xlu0 0
  %782 = vperm.xlu0 %781, %v626
  %v783 = vpop.permute.xlu0 %782
  %786 = vset.pattern.permute.xlu0 0
  %787 = vperm.xlu0 %786, %v627
  %v788 = vpop.permute.xlu0 %787
  %791 = vset.pattern.permute.xlu0 0
  %792 = vperm.xlu0 %791, %v628
  %v793 = vpop.permute.xlu0 %792
  %796 = vset.pattern.permute.xlu0 0
  %797 = vperm.xlu0 %796, %v629
  %v798 = vpop.permute.xlu0 %797
  %801 = vset.pattern.permute.xlu0 0
  %802 = vperm.xlu0 %801, %v630
  %v803 = vpop.permute.xlu0 %802
  %806 = vset.pattern.permute.xlu0 0
  %807 = vperm.xlu0 %806, %v631
  %v808 = vpop.permute.xlu0 %807
  %811 = vset.pattern.permute.xlu0 0
  %812 = vperm.xlu0 %811, %v632
  %v813 = vpop.permute.xlu0 %812
  %816 = vset.pattern.permute.xlu0 0
  %817 = vperm.xlu0 %816, %v633
  %v818 = vpop.permute.xlu0 %817
  %821 = vset.pattern.permute.xlu0 0
  %822 = vperm.xlu0 %821, %v634
  %v823 = vpop.permute.xlu0 %822
  %826 = vset.pattern.permute.xlu0 0
  %827 = vperm.xlu0 %826, %v635
  %v828 = vpop.permute.xlu0 %827
  %831 = vset.pattern.permute.xlu0 0
  %832 = vperm.xlu0 %831, %v636
  %v833 = vpop.permute.xlu0 %832
  %836 = vset.pattern.permute.xlu0 0
  %837 = vperm.xlu0 %836, %v637
  %v838 = vpop.permute.xlu0 %837
  %841 = vset.pattern.permute.xlu0 0
  %842 = vperm.xlu0 %841, %v638
  %v843 = vpop.permute.xlu0 %842
  %846 = vset.pattern.permute.xlu0 0
  %847 = vperm.xlu0 %846, %v639
  %v848 = vpop.permute.xlu0 %847
  %851 = vset.pattern.permute.xlu0 0
  %852 = vperm.xlu0 %851, %v640
  %v853 = vpop.permute.xlu0 %852
  %856 = vset.pattern.permute.xlu0 0
  %857 = vperm.xlu0 %856, %v641
  %v858 = vpop.permute.xlu0 %857
  %861 = vset.pattern.permute.xlu0 0
  %862 = vperm.xlu0 %861, %v642
  %v863 = vpop.permute.xlu0 %862
  %866 = vset.pattern.permute.xlu0 0
  %867 = vperm.xlu0 %866, %v643
  %v868 = vpop.permute.xlu0 %867
  %871 = vset.pattern.permute.xlu0 0
  %872 = vperm.xlu0 %871, %v644
  %v873 = vpop.permute.xlu0 %872
  %876 = vset.pattern.permute.xlu0 0
  %877 = vperm.xlu0 %876, %v645
  %v878 = vpop.permute.xlu0 %877
  %881 = vset.pattern.permute.xlu0 0
  %882 = vperm.xlu0 %881, %v646
  %v883 = vpop.permute.xlu0 %882
  %886 = vset.pattern.permute.xlu0 0
  %887 = vperm.xlu0 %886, %v647
  %v888 = vpop.permute.xlu0 %887
  %891 = vset.pattern.permute.xlu0 0
  %892 = vperm.xlu0 %891, %v648
  %v893 = vpop.permute.xlu0 %892
  %896 = vset.pattern.permute.xlu0 0
  %897 = vperm.xlu0 %896, %v649
  %v898 = vpop.permute.xlu0 %897
  %vm900 = vcmask 588800
  %v902 = vsel %vm900, %v501, 0
  %v905 = vsel %vm900, %v503, 0
  %v908 = vsel %vm900, %v505, 0
  %v911 = vsel %vm900, %v507, 0
  %v914 = vsel %vm900, %v509, 0
  %v917 = vsel %vm900, %v511, 0
  %v920 = vsel %vm900, %v513, 0
  %v923 = vsel %vm900, %v515, 0
  %v926 = vsel %vm900, %v517, 0
  %v929 = vsel %vm900, %v519, 0
  %v932 = vsel %vm900, %v521, 0
  %v935 = vsel %vm900, %v523, 0
  %v938 = vsel %vm900, %v525, 0
  %v941 = vsel %vm900, %v527, 0
  %v944 = vsel %vm900, %v529, 0
  %v947 = vsel %vm900, %v531, 0
  %v950 = vsel %vm900, %v533, 0
  %v953 = vsel %vm900, %v535, 0
  %v956 = vsel %vm900, %v537, 0
  %v959 = vsel %vm900, %v539, 0
  %v962 = vsel %vm900, %v541, 0
  %v965 = vsel %vm900, %v543, 0
  %v968 = vsel %vm900, %v545, 0
  %v971 = vsel %vm900, %v547, 0
  %v974 = vsel %vm900, %v549, 0
  %v977 = vsel %vm900, %v551, 0
  %v980 = vsel %vm900, %v553, 0
  %v983 = vsel %vm900, %v555, 0
  %v986 = vsel %vm900, %v557, 0
  %v989 = vsel %vm900, %v559, 0
  %v992 = vsel %vm900, %v561, 0
  %v995 = vsel %vm900, %v563, 0
  %v998 = vsel %vm900, %v565, 0
  %v1001 = vsel %vm900, %v567, 0
  %v1004 = vsel %vm900, %v569, 0
  %v1007 = vsel %vm900, %v571, 0
  %v1010 = vsel %vm900, %v573, 0
  %v1013 = vsel %vm900, %v575, 0
  %v1016 = vsel %vm900, %v577, 0
  %v1019 = vsel %vm900, %v579, 0
  %v1022 = vsel %vm900, %v581, 0
  %v1025 = vsel %vm900, %v583, 0
  %v1028 = vsel %vm900, %v585, 0
  %v1031 = vsel %vm900, %v587, 0
  %v1034 = vsel %vm900, %v589, 0
  %v1037 = vsel %vm900, %v591, 0
  %v1040 = vsel %vm900, %v593, 0
  %v1043 = vsel %vm900, %v595, 0
  %v1046 = vsel %vm900, %v597, 0
  %v1049 = vsel %vm900, %v599, 0
  %1051 = vmatprep.subr.mxu0 0.0
  %1052 = vmatpush1.msra.mxu0 %v490
  %1053 = vmatprep.subr.mxu0 0.0
  %1054 = vmatpush1.msra.mxu0 %v489
  %1055 = vmatprep.subr.mxu0 0.0
  %1056 = vmatpush1.msra.mxu0 %v488
  %1057 = vmatprep.subr.mxu0 0.0
  %1058 = vmatpush1.msra.mxu0 %v487
  %1059 = vmatprep.subr.mxu0 0.0
  %1060 = vmatpush1.msra.mxu0 %v486
  %1061 = vmatprep.subr.mxu0 0.0
  %1062 = vmatpush1.msra.mxu0 %v485
  %1063 = vmatprep.subr.mxu0 0.0
  %1064 = vmatpush1.msra.mxu0 %v484
  %1065 = vmatprep.subr.mxu0 0.0
  %1066 = vmatpush1.msra.mxu0 %v483
  %1067 = vmatprep.subr.mxu0 0.0
  %1068 = vmatpush1.msra.mxu0 %v482
  %1069 = vmatprep.subr.mxu0 0.0
  %1070 = vmatpush1.msra.mxu0 %v481
  %1071 = vmatprep.subr.mxu0 0.0
  %1072 = vmatpush1.msra.mxu0 %v480
  %1073 = vmatprep.subr.mxu0 0.0
  %1074 = vmatpush1.msra.mxu0 %v479
  %1075 = vmatprep.subr.mxu0 0.0
  %1076 = vmatpush1.msra.mxu0 %v478
  %1077 = vmatprep.subr.mxu0 0.0
  %1078 = vmatpush1.msra.mxu0 %v477
  %1079 = vmatprep.subr.mxu0 0.0
  %1080 = vmatpush1.msra.mxu0 %v476
  %1081 = vmatprep.subr.mxu0 0.0
  %1082 = vmatpush1.msra.mxu0 %v475
  %1083 = vmatprep.subr.mxu0 0.0
  %1084 = vmatpush2.msra.mxu0 0.0
  %1085 = vmatprep.subr.mxu0 0.0
  %1086 = vmatpush2.msra.mxu0 0.0
  %1087 = vmatprep.subr.mxu0 0.0
  %1088 = vmatpush2.msra.mxu0 0.0
  %1089 = vmatprep.subr.mxu0 0.0
  %1090 = vmatpush2.msra.mxu0 0.0
  %1091 = vmatprep.subr.mxu0 0.0
  %1092 = vmatpush2.msra.mxu0 0.0
  %1093 = vmatprep.subr.mxu0 0.0
  %1094 = vmatpush2.msra.mxu0 0.0
  %1095 = vmatprep.subr.mxu0 0.0
  %1096 = vmatpush2.msra.mxu0 0.0
  %1097 = vmatprep.subr.mxu0 0.0
  %1098 = vmatpush2.msra.mxu0 %v499
  %1099 = vmatprep.subr.mxu0 0.0
  %1100 = vmatpush2.msra.mxu0 %v498
  %1101 = vmatprep.subr.mxu0 0.0
  %1102 = vmatpush2.msra.mxu0 %v497
  %1103 = vmatprep.subr.mxu0 0.0
  %1104 = vmatpush2.msra.mxu0 %v496
  %1105 = vmatprep.subr.mxu0 0.0
  %1106 = vmatpush2.msra.mxu0 %v495
  %1107 = vmatprep.subr.mxu0 0.0
  %1108 = vmatpush2.msra.mxu0 %v494
  %1109 = vmatprep.subr.mxu0 0.0
  %1110 = vmatpush2.msra.mxu0 %v493
  %1111 = vmatprep.subr.mxu0 0.0
  %1112 = vmatpush2.msra.mxu0 %v492
  %1113 = vmatprep.subr.mxu0 0.0
  %1114 = vmatpush2.msra.mxu0 %v491
  %1115 = vmatprep.mubr.f32.mxu0 %v902
  %1116 = vmatmul.mubr.f32.gmra.mxu0 %v500
  %v1117 = vpop.f32.mrf.mxu0
  %v1118 = vadd.f32 %v653, %v1117
  %v1119 = vpop.f32.mrf.mxu0
  %1120 = vmatprep.mubr.f32.mxu0 %v905
  %1121 = vmatmul.mubr.f32.gmra.mxu0 %v502
  %v1122 = vpop.f32.mrf.mxu0
  %v1123 = vadd.f32 %v658, %v1122
  %v1124 = vpop.f32.mrf.mxu0
  %1125 = vmatprep.mubr.f32.mxu0 %v908
  %1126 = vmatmul.mubr.f32.gmra.mxu0 %v504
  %v1127 = vpop.f32.mrf.mxu0
  %v1128 = vadd.f32 %v663, %v1127
  %v1129 = vpop.f32.mrf.mxu0
  %1130 = vmatprep.mubr.f32.mxu0 %v911
  %1131 = vmatmul.mubr.f32.gmra.mxu0 %v506
  %v1132 = vpop.f32.mrf.mxu0
  %v1133 = vadd.f32 %v668, %v1132
  %v1134 = vpop.f32.mrf.mxu0
  %1135 = vmatprep.mubr.f32.mxu0 %v914
  %1136 = vmatmul.mubr.f32.gmra.mxu0 %v508
  %v1137 = vpop.f32.mrf.mxu0
  %v1138 = vadd.f32 %v673, %v1137
  %v1139 = vpop.f32.mrf.mxu0
  %1140 = vmatprep.mubr.f32.mxu0 %v917
  %1141 = vmatmul.mubr.f32.gmra.mxu0 %v510
  %v1142 = vpop.f32.mrf.mxu0
  %v1143 = vadd.f32 %v678, %v1142
  %v1144 = vpop.f32.mrf.mxu0
  %1145 = vmatprep.mubr.f32.mxu0 %v920
  %1146 = vmatmul.mubr.f32.gmra.mxu0 %v512
  %v1147 = vpop.f32.mrf.mxu0
  %v1148 = vadd.f32 %v683, %v1147
  %v1149 = vpop.f32.mrf.mxu0
  %1150 = vmatprep.mubr.f32.mxu0 %v923
  %1151 = vmatmul.mubr.f32.gmra.mxu0 %v514
  %v1152 = vpop.f32.mrf.mxu0
  %v1153 = vadd.f32 %v688, %v1152
  %v1154 = vpop.f32.mrf.mxu0
  %1155 = vmatprep.mubr.f32.mxu0 %v926
  %1156 = vmatmul.mubr.f32.gmra.mxu0 %v516
  %v1157 = vpop.f32.mrf.mxu0
  %v1158 = vadd.f32 %v693, %v1157
  %v1159 = vpop.f32.mrf.mxu0
  %1160 = vmatprep.mubr.f32.mxu0 %v929
  %1161 = vmatmul.mubr.f32.gmra.mxu0 %v518
  %v1162 = vpop.f32.mrf.mxu0
  %v1163 = vadd.f32 %v698, %v1162
  %v1164 = vpop.f32.mrf.mxu0
  %1165 = vmatprep.mubr.f32.mxu0 %v932
  %1166 = vmatmul.mubr.f32.gmra.mxu0 %v520
  %v1167 = vpop.f32.mrf.mxu0
  %v1168 = vadd.f32 %v703, %v1167
  %v1169 = vpop.f32.mrf.mxu0
  %1170 = vmatprep.mubr.f32.mxu0 %v935
  %1171 = vmatmul.mubr.f32.gmra.mxu0 %v522
  %v1172 = vpop.f32.mrf.mxu0
  %v1173 = vadd.f32 %v708, %v1172
  %v1174 = vpop.f32.mrf.mxu0
  %1175 = vmatprep.mubr.f32.mxu0 %v938
  %1176 = vmatmul.mubr.f32.gmra.mxu0 %v524
  %v1177 = vpop.f32.mrf.mxu0
  %v1178 = vadd.f32 %v713, %v1177
  %v1179 = vpop.f32.mrf.mxu0
  %1180 = vmatprep.mubr.f32.mxu0 %v941
  %1181 = vmatmul.mubr.f32.gmra.mxu0 %v526
  %v1182 = vpop.f32.mrf.mxu0
  %v1183 = vadd.f32 %v718, %v1182
  %v1184 = vpop.f32.mrf.mxu0
  %1185 = vmatprep.mubr.f32.mxu0 %v944
  %1186 = vmatmul.mubr.f32.gmra.mxu0 %v528
  %v1187 = vpop.f32.mrf.mxu0
  %v1188 = vadd.f32 %v723, %v1187
  %v1189 = vpop.f32.mrf.mxu0
  %1190 = vmatprep.mubr.f32.mxu0 %v947
  %1191 = vmatmul.mubr.f32.gmra.mxu0 %v530
  %v1192 = vpop.f32.mrf.mxu0
  %v1193 = vadd.f32 %v728, %v1192
  %v1194 = vpop.f32.mrf.mxu0
  %1195 = vmatprep.mubr.f32.mxu0 %v950
  %1196 = vmatmul.mubr.f32.gmra.mxu0 %v532
  %v1197 = vpop.f32.mrf.mxu0
  %v1198 = vadd.f32 %v733, %v1197
  %v1199 = vpop.f32.mrf.mxu0
  %1200 = vmatprep.mubr.f32.mxu0 %v953
  %1201 = vmatmul.mubr.f32.gmra.mxu0 %v534
  %v1202 = vpop.f32.mrf.mxu0
  %v1203 = vadd.f32 %v738, %v1202
  %v1204 = vpop.f32.mrf.mxu0
  %1205 = vmatprep.mubr.f32.mxu0 %v956
  %1206 = vmatmul.mubr.f32.gmra.mxu0 %v536
  %v1207 = vpop.f32.mrf.mxu0
  %v1208 = vadd.f32 %v743, %v1207
  %v1209 = vpop.f32.mrf.mxu0
  %1210 = vmatprep.mubr.f32.mxu0 %v959
  %1211 = vmatmul.mubr.f32.gmra.mxu0 %v538
  %v1212 = vpop.f32.mrf.mxu0
  %v1213 = vadd.f32 %v748, %v1212
  %v1214 = vpop.f32.mrf.mxu0
  %1215 = vmatprep.mubr.f32.mxu0 %v962
  %1216 = vmatmul.mubr.f32.gmra.mxu0 %v540
  %v1217 = vpop.f32.mrf.mxu0
  %v1218 = vadd.f32 %v753, %v1217
  %v1219 = vpop.f32.mrf.mxu0
  %1220 = vmatprep.mubr.f32.mxu0 %v965
  %1221 = vmatmul.mubr.f32.gmra.mxu0 %v542
  %v1222 = vpop.f32.mrf.mxu0
  %v1223 = vadd.f32 %v758, %v1222
  %v1224 = vpop.f32.mrf.mxu0
  %1225 = vmatprep.mubr.f32.mxu0 %v968
  %1226 = vmatmul.mubr.f32.gmra.mxu0 %v544
  %v1227 = vpop.f32.mrf.mxu0
  %v1228 = vadd.f32 %v763, %v1227
  %v1229 = vpop.f32.mrf.mxu0
  %1230 = vmatprep.mubr.f32.mxu0 %v971
  %1231 = vmatmul.mubr.f32.gmra.mxu0 %v546
  %v1232 = vpop.f32.mrf.mxu0
  %v1233 = vadd.f32 %v768, %v1232
  %v1234 = vpop.f32.mrf.mxu0
  %1235 = vmatprep.mubr.f32.mxu0 %v974
  %1236 = vmatmul.mubr.f32.gmra.mxu0 %v548
  %v1237 = vpop.f32.mrf.mxu0
  %v1238 = vadd.f32 %v773, %v1237
  %v1239 = vpop.f32.mrf.mxu0
  %1240 = vmatprep.mubr.f32.mxu0 %v977
  %1241 = vmatmul.mubr.f32.gmra.mxu0 %v550
  %v1242 = vpop.f32.mrf.mxu0
  %v1243 = vadd.f32 %v778, %v1242
  %v1244 = vpop.f32.mrf.mxu0
  %1245 = vmatprep.mubr.f32.mxu0 %v980
  %1246 = vmatmul.mubr.f32.gmra.mxu0 %v552
  %v1247 = vpop.f32.mrf.mxu0
  %v1248 = vadd.f32 %v783, %v1247
  %v1249 = vpop.f32.mrf.mxu0
  %1250 = vmatprep.mubr.f32.mxu0 %v983
  %1251 = vmatmul.mubr.f32.gmra.mxu0 %v554
  %v1252 = vpop.f32.mrf.mxu0
  %v1253 = vadd.f32 %v788, %v1252
  %v1254 = vpop.f32.mrf.mxu0
  %1255 = vmatprep.mubr.f32.mxu0 %v986
  %1256 = vmatmul.mubr.f32.gmra.mxu0 %v556
  %v1257 = vpop.f32.mrf.mxu0
  %v1258 = vadd.f32 %v793, %v1257
  %v1259 = vpop.f32.mrf.mxu0
  %1260 = vmatprep.mubr.f32.mxu0 %v989
  %1261 = vmatmul.mubr.f32.gmra.mxu0 %v558
  %v1262 = vpop.f32.mrf.mxu0
  %v1263 = vadd.f32 %v798, %v1262
  %v1264 = vpop.f32.mrf.mxu0
  %1265 = vmatprep.mubr.f32.mxu0 %v992
  %1266 = vmatmul.mubr.f32.gmra.mxu0 %v560
  %v1267 = vpop.f32.mrf.mxu0
  %v1268 = vadd.f32 %v803, %v1267
  %v1269 = vpop.f32.mrf.mxu0
  %1270 = vmatprep.mubr.f32.mxu0 %v995
  %1271 = vmatmul.mubr.f32.gmra.mxu0 %v562
  %v1272 = vpop.f32.mrf.mxu0
  %v1273 = vadd.f32 %v808, %v1272
  %v1274 = vpop.f32.mrf.mxu0
  %1275 = vmatprep.mubr.f32.mxu0 %v998
  %1276 = vmatmul.mubr.f32.gmra.mxu0 %v564
  %v1277 = vpop.f32.mrf.mxu0
  %v1278 = vadd.f32 %v813, %v1277
  %v1279 = vpop.f32.mrf.mxu0
  %1280 = vmatprep.mubr.f32.mxu0 %v1001
  %1281 = vmatmul.mubr.f32.gmra.mxu0 %v566
  %v1282 = vpop.f32.mrf.mxu0
  %v1283 = vadd.f32 %v818, %v1282
  %v1284 = vpop.f32.mrf.mxu0
  %1285 = vmatprep.mubr.f32.mxu0 %v1004
  %1286 = vmatmul.mubr.f32.gmra.mxu0 %v568
  %v1287 = vpop.f32.mrf.mxu0
  %v1288 = vadd.f32 %v823, %v1287
  %v1289 = vpop.f32.mrf.mxu0
  %1290 = vmatprep.mubr.f32.mxu0 %v1007
  %1291 = vmatmul.mubr.f32.gmra.mxu0 %v570
  %v1292 = vpop.f32.mrf.mxu0
  %v1293 = vadd.f32 %v828, %v1292
  %v1294 = vpop.f32.mrf.mxu0
  %1295 = vmatprep.mubr.f32.mxu0 %v1010
  %1296 = vmatmul.mubr.f32.gmra.mxu0 %v572
  %v1297 = vpop.f32.mrf.mxu0
  %v1298 = vadd.f32 %v833, %v1297
  %v1299 = vpop.f32.mrf.mxu0
  %1300 = vmatprep.mubr.f32.mxu0 %v1013
  %1301 = vmatmul.mubr.f32.gmra.mxu0 %v574
  %v1302 = vpop.f32.mrf.mxu0
  %v1303 = vadd.f32 %v838, %v1302
  %v1304 = vpop.f32.mrf.mxu0
  %1305 = vmatprep.mubr.f32.mxu0 %v1016
  %1306 = vmatmul.mubr.f32.gmra.mxu0 %v576
  %v1307 = vpop.f32.mrf.mxu0
  %v1308 = vadd.f32 %v843, %v1307
  %v1309 = vpop.f32.mrf.mxu0
  %1310 = vmatprep.mubr.f32.mxu0 %v1019
  %1311 = vmatmul.mubr.f32.gmra.mxu0 %v578
  %v1312 = vpop.f32.mrf.mxu0
  %v1313 = vadd.f32 %v848, %v1312
  %v1314 = vpop.f32.mrf.mxu0
  %1315 = vmatprep.mubr.f32.mxu0 %v1022
  %1316 = vmatmul.mubr.f32.gmra.mxu0 %v580
  %v1317 = vpop.f32.mrf.mxu0
  %v1318 = vadd.f32 %v853, %v1317
  %v1319 = vpop.f32.mrf.mxu0
  %1320 = vmatprep.mubr.f32.mxu0 %v1025
  %1321 = vmatmul.mubr.f32.gmra.mxu0 %v582
  %v1322 = vpop.f32.mrf.mxu0
  %v1323 = vadd.f32 %v858, %v1322
  %v1324 = vpop.f32.mrf.mxu0
  %1325 = vmatprep.mubr.f32.mxu0 %v1028
  %1326 = vmatmul.mubr.f32.gmra.mxu0 %v584
  %v1327 = vpop.f32.mrf.mxu0
  %v1328 = vadd.f32 %v863, %v1327
  %v1329 = vpop.f32.mrf.mxu0
  %1330 = vmatprep.mubr.f32.mxu0 %v1031
  %1331 = vmatmul.mubr.f32.gmra.mxu0 %v586
  %v1332 = vpop.f32.mrf.mxu0
  %v1333 = vadd.f32 %v868, %v1332
  %v1334 = vpop.f32.mrf.mxu0
  %1335 = vmatprep.mubr.f32.mxu0 %v1034
  %1336 = vmatmul.mubr.f32.gmra.mxu0 %v588
  %v1337 = vpop.f32.mrf.mxu0
  %v1338 = vadd.f32 %v873, %v1337
  %v1339 = vpop.f32.mrf.mxu0
  %1340 = vmatprep.mubr.f32.mxu0 %v1037
  %1341 = vmatmul.mubr.f32.gmra.mxu0 %v590
  %v1342 = vpop.f32.mrf.mxu0
  %v1343 = vadd.f32 %v878, %v1342
  %v1344 = vpop.f32.mrf.mxu0
  %1345 = vmatprep.mubr.f32.mxu0 %v1040
  %1346 = vmatmul.mubr.f32.gmra.mxu0 %v592
  %v1347 = vpop.f32.mrf.mxu0
  %v1348 = vadd.f32 %v883, %v1347
  %v1349 = vpop.f32.mrf.mxu0
  %1350 = vmatprep.mubr.f32.mxu0 %v1043
  %1351 = vmatmul.mubr.f32.gmra.mxu0 %v594
  %v1352 = vpop.f32.mrf.mxu0
  %v1353 = vadd.f32 %v888, %v1352
  %v1354 = vpop.f32.mrf.mxu0
  %1355 = vmatprep.mubr.f32.mxu0 %v1046
  %1356 = vmatmul.mubr.f32.gmra.mxu0 %v596
  %v1357 = vpop.f32.mrf.mxu0
  %v1358 = vadd.f32 %v893, %v1357
  %v1359 = vpop.f32.mrf.mxu0
  %1360 = vmatprep.mubr.f32.mxu0 %v1049
  %1361 = vmatmul.mubr.f32.gmra.mxu0 %v598
  %v1362 = vpop.f32.mrf.mxu0
  %v1363 = vadd.f32 %v898, %v1362
  %v1364 = vpop.f32.mrf.mxu0
  %1365 = vdwg.mxu0
  %v1366 = vmax.f32 %v1118, 0.0
  %v1367 = vmax.f32 %v1123, 0.0
  %v1368 = vmax.f32 %v1128, 0.0
  %v1369 = vmax.f32 %v1133, 0.0
  %v1370 = vmax.f32 %v1138, 0.0
  %v1371 = vmax.f32 %v1143, 0.0
  %v1372 = vmax.f32 %v1148, 0.0
  %v1373 = vmax.f32 %v1153, 0.0
  %v1374 = vmax.f32 %v1158, 0.0
  %v1375 = vmax.f32 %v1163, 0.0
  %v1376 = vmax.f32 %v1168, 0.0
  %v1377 = vmax.f32 %v1173, 0.0
  %v1378 = vmax.f32 %v1178, 0.0
  %v1379 = vmax.f32 %v1183, 0.0
  %v1380 = vmax.f32 %v1188, 0.0
  %v1381 = vmax.f32 %v1193, 0.0
  %v1382 = vmax.f32 %v1198, 0.0
  %v1383 = vmax.f32 %v1203, 0.0
  %v1384 = vmax.f32 %v1208, 0.0
  %v1385 = vmax.f32 %v1213, 0.0
  %v1386 = vmax.f32 %v1218, 0.0
  %v1387 = vmax.f32 %v1223, 0.0
  %v1388 = vmax.f32 %v1228, 0.0
  %v1389 = vmax.f32 %v1233, 0.0
  %v1390 = vmax.f32 %v1238, 0.0
  %v1391 = vmax.f32 %v1243, 0.0
  %v1392 = vmax.f32 %v1248, 0.0
  %v1393 = vmax.f32 %v1253, 0.0
  %v1394 = vmax.f32 %v1258, 0.0
  %v1395 = vmax.f32 %v1263, 0.0
  %v1396 = vmax.f32 %v1268, 0.0
  %v1397 = vmax.f32 %v1273, 0.0
  %v1398 = vmax.f32 %v1278, 0.0
  %v1399 = vmax.f32 %v1283, 0.0
  %v1400 = vmax.f32 %v1288, 0.0
  %v1401 = vmax.f32 %v1293, 0.0
  %v1402 = vmax.f32 %v1298, 0.0
  %v1403 = vmax.f32 %v1303, 0.0
  %v1404 = vmax.f32 %v1308, 0.0
  %v1405 = vmax.f32 %v1313, 0.0
  %v1406 = vmax.f32 %v1318, 0.0
  %v1407 = vmax.f32 %v1323, 0.0
  %v1408 = vmax.f32 %v1328, 0.0
  %v1409 = vmax.f32 %v1333, 0.0
  %v1410 = vmax.f32 %v1338, 0.0
  %v1411 = vmax.f32 %v1343, 0.0
  %v1412 = vmax.f32 %v1348, 0.0
  %v1413 = vmax.f32 %v1353, 0.0
  %v1414 = vmax.f32 %v1358, 0.0
  %v1415 = vmax.f32 %v1363, 0.0
  %v1416 = vld [vmem:[%s5] sm:$0xff]
  %v1417 = vld [vmem:[%s5 + $0x8] sm:$0xff]
  %v1418 = vld [vmem:[%s5 + $0x10] sm:$0xff]
  %v1419 = vld [vmem:[%s5 + $0x18] sm:$0xff]
  %v1420 = vld [vmem:[%s5 + $0x20] sm:$0xff]
  %v1421 = vld [vmem:[%s5 + $0x28] sm:$0xff]
  %v1422 = vld [vmem:[%s5 + $0x30] sm:$0xff]
  %v1423 = vld [vmem:[%s5 + $0x38] sm:$0xff]
  %v1424 = vld [vmem:[%s5 + $0x40] sm:$0xff]
  %v1425 = vld [vmem:[%s5 + $0x48] sm:$0xff]
  %v1426 = vld [vmem:[%s5 + $0x50] sm:$0xff]
  %v1427 = vld [vmem:[%s5 + $0x58] sm:$0xff]
  %v1428 = vld [vmem:[%s5 + $0x60] sm:$0xff]
  %v1429 = vld [vmem:[%s5 + $0x68] sm:$0xff]
  %v1430 = vld [vmem:[%s5 + $0x70] sm:$0xff]
  %v1431 = vld [vmem:[%s5 + $0x78] sm:$0xff]
  %v1432 = vld [vmem:[%s6] sm:$0xff]
  %v1433 = vld [vmem:[%s6 + $0x8] sm:$0xff]
  %v1434 = vld [vmem:[%s6 + $0x10] sm:$0xff]
  %v1435 = vld [vmem:[%s6 + $0x18] sm:$0xff]
  %1437 = vset.pattern.permute.xlu0 0
  %1438 = vperm.xlu0 %1437, %v1432
  %v1439 = vpop.permute.xlu0 %1438
  %1442 = vset.pattern.permute.xlu0 0
  %1443 = vperm.xlu0 %1442, %v1433
  %v1444 = vpop.permute.xlu0 %1443
  %1447 = vset.pattern.permute.xlu0 0
  %1448 = vperm.xlu0 %1447, %v1434
  %v1449 = vpop.permute.xlu0 %1448
  %1452 = vset.pattern.permute.xlu0 0
  %1453 = vperm.xlu0 %1452, %v1435
  %v1454 = vpop.permute.xlu0 %1453
  %vm1456 = vcmask 130048
  %v1458 = vsel %vm1456, %v1419, 0
  %v1461 = vsel %vm1456, %v1423, 0
  %v1464 = vsel %vm1456, %v1427, 0
  %v1467 = vsel %vm1456, %v1431, 0
  %1469 = vmatprep.subr.mxu0 0.0
  %1470 = vmatpush1.msra.mxu0 %v1381
  %1471 = vmatprep.subr.mxu0 0.0
  %1472 = vmatpush1.msra.mxu0 %v1380
  %1473 = vmatprep.subr.mxu0 0.0
  %1474 = vmatpush1.msra.mxu0 %v1379
  %1475 = vmatprep.subr.mxu0 0.0
  %1476 = vmatpush1.msra.mxu0 %v1378
  %1477 = vmatprep.subr.mxu0 0.0
  %1478 = vmatpush1.msra.mxu0 %v1377
  %1479 = vmatprep.subr.mxu0 0.0
  %1480 = vmatpush1.msra.mxu0 %v1376
  %1481 = vmatprep.subr.mxu0 0.0
  %1482 = vmatpush1.msra.mxu0 %v1375
  %1483 = vmatprep.subr.mxu0 0.0
  %1484 = vmatpush1.msra.mxu0 %v1374
  %1485 = vmatprep.subr.mxu0 0.0
  %1486 = vmatpush1.msra.mxu0 %v1373
  %1487 = vmatprep.subr.mxu0 0.0
  %1488 = vmatpush1.msra.mxu0 %v1372
  %1489 = vmatprep.subr.mxu0 0.0
  %1490 = vmatpush1.msra.mxu0 %v1371
  %1491 = vmatprep.subr.mxu0 0.0
  %1492 = vmatpush1.msra.mxu0 %v1370
  %1493 = vmatprep.subr.mxu0 0.0
  %1494 = vmatpush1.msra.mxu0 %v1369
  %1495 = vmatprep.subr.mxu0 0.0
  %1496 = vmatpush1.msra.mxu0 %v1368
  %1497 = vmatprep.subr.mxu0 0.0
  %1498 = vmatpush1.msra.mxu0 %v1367
  %1499 = vmatprep.subr.mxu0 0.0
  %1500 = vmatpush1.msra.mxu0 %v1366
  %1501 = vmatprep.subr.mxu0 0.0
  %1502 = vmatpush2.msra.mxu0 %v1397
  %1503 = vmatprep.subr.mxu0 0.0
  %1504 = vmatpush2.msra.mxu0 %v1396
  %1505 = vmatprep.subr.mxu0 0.0
  %1506 = vmatpush2.msra.mxu0 %v1395
  %1507 = vmatprep.subr.mxu0 0.0
  %1508 = vmatpush2.msra.mxu0 %v1394
  %1509 = vmatprep.subr.mxu0 0.0
  %1510 = vmatpush2.msra.mxu0 %v1393
  %1511 = vmatprep.subr.mxu0 0.0
  %1512 = vmatpush2.msra.mxu0 %v1392
  %1513 = vmatprep.subr.mxu0 0.0
  %1514 = vmatpush2.msra.mxu0 %v1391
  %1515 = vmatprep.subr.mxu0 0.0
  %1516 = vmatpush2.msra.mxu0 %v1390
  %1517 = vmatprep.subr.mxu0 0.0
  %1518 = vmatpush2.msra.mxu0 %v1389
  %1519 = vmatprep.subr.mxu0 0.0
  %1520 = vmatpush2.msra.mxu0 %v1388
  %1521 = vmatprep.subr.mxu0 0.0
  %1522 = vmatpush2.msra.mxu0 %v1387
  %1523 = vmatprep.subr.mxu0 0.0
  %1524 = vmatpush2.msra.mxu0 %v1386
  %1525 = vmatprep.subr.mxu0 0.0
  %1526 = vmatpush2.msra.mxu0 %v1385
  %1527 = vmatprep.subr.mxu0 0.0
  %1528 = vmatpush2.msra.mxu0 %v1384
  %1529 = vmatprep.subr.mxu0 0.0
  %1530 = vmatpush2.msra.mxu0 %v1383
  %1531 = vmatprep.subr.mxu0 0.0
  %1532 = vmatpush2.msra.mxu0 %v1382
  %1533 = vmatprep.mubr.f32.mxu0 %v1417
  %1534 = vmatmul.mubr.f32.gmra.mxu0 %v1416
  %v1535 = vpop.f32.mrf.mxu0
  %v1536 = vadd.f32 %v1439, %v1535
  %v1537 = vpop.f32.mrf.mxu0
  %1538 = vmatprep.mubr.f32.mxu0 %v1421
  %1539 = vmatmul.mubr.f32.gmra.mxu0 %v1420
  %v1540 = vpop.f32.mrf.mxu0
  %v1541 = vadd.f32 %v1444, %v1540
  %v1542 = vpop.f32.mrf.mxu0
  %1543 = vmatprep.mubr.f32.mxu0 %v1425
  %1544 = vmatmul.mubr.f32.gmra.mxu0 %v1424
  %v1545 = vpop.f32.mrf.mxu0
  %v1546 = vadd.f32 %v1449, %v1545
  %v1547 = vpop.f32.mrf.mxu0
  %1548 = vmatprep.mubr.f32.mxu0 %v1429
  %1549 = vmatmul.mubr.f32.gmra.mxu0 %v1428
  %v1550 = vpop.f32.mrf.mxu0
  %v1551 = vadd.f32 %v1454, %v1550
  %v1552 = vpop.f32.mrf.mxu0
  %1553 = vdwg.mxu0
  %1554 = vmatprep.subr.mxu0 0.0
  %1555 = vmatpush1.msra.mxu0 %v1413
  %1556 = vmatprep.subr.mxu0 0.0
  %1557 = vmatpush1.msra.mxu0 %v1412
  %1558 = vmatprep.subr.mxu0 0.0
  %1559 = vmatpush1.msra.mxu0 %v1411
  %1560 = vmatprep.subr.mxu0 0.0
  %1561 = vmatpush1.msra.mxu0 %v1410
  %1562 = vmatprep.subr.mxu0 0.0
  %1563 = vmatpush1.msra.mxu0 %v1409
  %1564 = vmatprep.subr.mxu0 0.0
  %1565 = vmatpush1.msra.mxu0 %v1408
  %1566 = vmatprep.subr.mxu0 0.0
  %1567 = vmatpush1.msra.mxu0 %v1407
  %1568 = vmatprep.subr.mxu0 0.0
  %1569 = vmatpush1.msra.mxu0 %v1406
  %1570 = vmatprep.subr.mxu0 0.0
  %1571 = vmatpush1.msra.mxu0 %v1405
  %1572 = vmatprep.subr.mxu0 0.0
  %1573 = vmatpush1.msra.mxu0 %v1404
  %1574 = vmatprep.subr.mxu0 0.0
  %1575 = vmatpush1.msra.mxu0 %v1403
  %1576 = vmatprep.subr.mxu0 0.0
  %1577 = vmatpush1.msra.mxu0 %v1402
  %1578 = vmatprep.subr.mxu0 0.0
  %1579 = vmatpush1.msra.mxu0 %v1401
  %1580 = vmatprep.subr.mxu0 0.0
  %1581 = vmatpush1.msra.mxu0 %v1400
  %1582 = vmatprep.subr.mxu0 0.0
  %1583 = vmatpush1.msra.mxu0 %v1399
  %1584 = vmatprep.subr.mxu0 0.0
  %1585 = vmatpush1.msra.mxu0 %v1398
  %1586 = vmatprep.subr.mxu0 0.0
  %1587 = vmatpush2.msra.mxu0 0.0
  %1588 = vmatprep.subr.mxu0 0.0
  %1589 = vmatpush2.msra.mxu0 0.0
  %1590 = vmatprep.subr.mxu0 0.0
  %1591 = vmatpush2.msra.mxu0 0.0
  %1592 = vmatprep.subr.mxu0 0.0
  %1593 = vmatpush2.msra.mxu0 0.0
  %1594 = vmatprep.subr.mxu0 0.0
  %1595 = vmatpush2.msra.mxu0 0.0
  %1596 = vmatprep.subr.mxu0 0.0
  %1597 = vmatpush2.msra.mxu0 0.0
  %1598 = vmatprep.subr.mxu0 0.0
  %1599 = vmatpush2.msra.mxu0 0.0
  %1600 = vmatprep.subr.mxu0 0.0
  %1601 = vmatpush2.msra.mxu0 0.0
  %1602 = vmatprep.subr.mxu0 0.0
  %1603 = vmatpush2.msra.mxu0 0.0
  %1604 = vmatprep.subr.mxu0 0.0
  %1605 = vmatpush2.msra.mxu0 0.0
  %1606 = vmatprep.subr.mxu0 0.0
  %1607 = vmatpush2.msra.mxu0 0.0
  %1608 = vmatprep.subr.mxu0 0.0
  %1609 = vmatpush2.msra.mxu0 0.0
  %1610 = vmatprep.subr.mxu0 0.0
  %1611 = vmatpush2.msra.mxu0 0.0
  %1612 = vmatprep.subr.mxu0 0.0
  %1613 = vmatpush2.msra.mxu0 0.0
  %1614 = vmatprep.subr.mxu0 0.0
  %1615 = vmatpush2.msra.mxu0 %v1415
  %1616 = vmatprep.subr.mxu0 0.0
  %1617 = vmatpush2.msra.mxu0 %v1414
  %1618 = vmatprep.mubr.f32.mxu0 %v1458
  %1619 = vmatmul.mubr.f32.gmra.mxu0 %v1418
  %v1620 = vpop.f32.mrf.mxu0
  %v1621 = vadd.f32 %v1536, %v1620
  %v1622 = vpop.f32.mrf.mxu0
  %1623 = vmatprep.mubr.f32.mxu0 %v1461
  %1624 = vmatmul.mubr.f32.gmra.mxu0 %v1422
  %v1625 = vpop.f32.mrf.mxu0
  %v1626 = vadd.f32 %v1541, %v1625
  %v1627 = vpop.f32.mrf.mxu0
  %1628 = vmatprep.mubr.f32.mxu0 %v1464
  %1629 = vmatmul.mubr.f32.gmra.mxu0 %v1426
  %v1630 = vpop.f32.mrf.mxu0
  %v1631 = vadd.f32 %v1546, %v1630
  %v1632 = vpop.f32.mrf.mxu0
  %1633 = vmatprep.mubr.f32.mxu0 %v1467
  %1634 = vmatmul.mubr.f32.gmra.mxu0 %v1430
  %v1635 = vpop.f32.mrf.mxu0
  %v1636 = vadd.f32 %v1551, %v1635
  %v1637 = vpop.f32.mrf.mxu0
  %1638 = vdwg.mxu0
  %v1639 = vmax.f32 %v1621, 0.0
  %v1640 = vmax.f32 %v1626, 0.0
  %v1641 = vmax.f32 %v1631, 0.0
  %v1642 = vmax.f32 %v1636, 0.0
  %vm1643 = vcmask 15360
  %1644 = vst.msk [vmem:[%s7] sm:$0xff] %vm1643, %v1639
  %1645 = vst.msk [vmem:[%s7 + $0x8] sm:$0xff] %vm1643, %v1640
  %1646 = vst.msk [vmem:[%s7 + $0x10] sm:$0xff] %vm1643, %v1641
  %1647 = vst.msk [vmem:[%s7 + $0x18] sm:$0xff] %vm1643, %v1642
  // Predicated region
  $region30: #{vision_net_forward.1} parent=0 // pred_check
    _
  $region31: #{vision_net_forward.1} parent=0 // pred_check_branch
    %1649 = sbr.rel (0) target = $region33
  $region32: #{vision_net_forward.1} parent=0 // pred_region
    _
  $region33: #{vision_net_forward.1} parent=0 // pred_fallthru
    _
  // Predicated region
  $region34: #{vision_net_forward.1} parent=0 // pred_check
    _
  $region35: #{vision_net_forward.1} parent=0 // pred_check_branch
    %1651 = sbr.rel (0) target = $region37
  $region36: #{vision_net_forward.1} parent=0 // pred_region
    _
  $region37: #{vision_net_forward.1} parent=0 // pred_fallthru
    _

</llo_original>
